<compile_context>
chip_gen: v6e
topology: v6e:2x2x1
jax: 0.10.0
libtpu: 0.0.40
codegen_flags: <defaults>
</compile_context>

<pallas_src>
import functools

import jax
import jax.numpy as jnp
from jax import lax
from jax.experimental import pallas as pl
from jax.experimental.pallas import tpu as pltpu

# Problem configuration.  nn.Linear(160, out) forces hidden * Hf * Wf == 160,
# so: 16x16 input, kernel_size=2, hidden=40  ->  16->15->14->7->6->5->2 and
# flatten = 40 * 2 * 2 = 160.
BATCH = 2
IN_CH = 4
HIDDEN = 40
KSIZE = 2
HW = 16
OUT_CH = 5


# ----------------------------------------------------------------------------
# pltpu.roll direction probe (run once, eagerly, outside any jit trace).
# The kernel only ever needs "read the lane `s` positions to the right"; we
# probe the rotation convention with a tiny kernel and pick the shift sign
# accordingly, so the main kernel is robust either way.
# ----------------------------------------------------------------------------
@functools.cache
def _roll_is_left() -> bool:
    def probe(x_ref, o_ref):
        o_ref[...] = pltpu.roll(x_ref[...], 1, axis=1)

    x = jnp.broadcast_to(jnp.arange(128, dtype=jnp.float32), (8, 128))
    y = pl.pallas_call(
        probe,
        out_shape=jax.ShapeDtypeStruct((8, 128), jnp.float32),
        grid=(1,),
        in_specs=[pl.BlockSpec((8, 128), lambda i: (0, 0))],
        out_specs=pl.BlockSpec((8, 128), lambda i: (0, 0)),
    )(x)
    return bool(y[0, 0] == 1.0)


# ----------------------------------------------------------------------------
# In-kernel helpers.
# ----------------------------------------------------------------------------
def _shift(x, s, roll_left):
    """y[:, l] = x[:, l + s] (cyclic) for a static non-negative lane offset s."""
    if s == 0:
        return x
    n = x.shape[-1]
    return pltpu.roll(x, s if roll_left else n - s, axis=1)


def _conv_relu(x, w_ref, b, offsets, roll_left):
    """VALID conv + ReLU on the lane-flat layout.

    x: (Cin, L); w_ref: (K*K, Cout, Cin) ref; b: (Cout, 1); offsets: static
    per-tap lane offsets.  Lanes that hold out-of-range spatial positions end
    up with garbage that no later stage ever reads.
    """
    acc = None
    for t, s in enumerate(offsets):
        part = jnp.dot(w_ref[t], _shift(x, s, roll_left),
                       preferred_element_type=jnp.float32)
        acc = part if acc is None else acc + part
    return jnp.maximum(acc + b, 0.0)


def _maxpool2(x, row_off, col_off, roll_left):
    """2x2 / stride-2 max pool: two lane-rolls + pairwise max, no compaction."""
    t = jnp.maximum(x, _shift(x, row_off, roll_left))
    return jnp.maximum(t, _shift(t, col_off, roll_left))


def _make_kernel(off12, off34, pool1_off, pool2_off, roll_left):
    def kernel(x_ref, w1_ref, b1_ref, w2_ref, b2_ref, w3_ref, b3_ref,
               w4_ref, b4_ref, wa_ref, dmask_ref, par_ref, fold_ref, bl_ref,
               o_ref):
        h = _conv_relu(x_ref[...], w1_ref, b1_ref[...], off12, roll_left)
        h = _conv_relu(h, w2_ref, b2_ref[...], off12, roll_left)
        h = _maxpool2(h, pool1_off[0], pool1_off[1], roll_left)
        h = _conv_relu(h, w3_ref, b3_ref[...], off34, roll_left)
        h = _conv_relu(h, w4_ref, b4_ref[...], off34, roll_left)
        h = _maxpool2(h, pool2_off[0], pool2_off[1], roll_left)   # (HIDDEN, L)

        # Flatten + Linear: one HIDDEN contraction over all lanes, then two
        # tiny constant-matrix fold-ups selecting the 4 pooled lanes / sample.
        z = jnp.dot(wa_ref[...], h, preferred_element_type=jnp.float32)
        t = jnp.dot(z * dmask_ref[...], par_ref[...],
                    preferred_element_type=jnp.float32)
        o_ref[...] = jnp.dot(fold_ref[...], t,
                             preferred_element_type=jnp.float32) + bl_ref[...]
    return kernel


# ----------------------------------------------------------------------------
# Wrapper.
# ----------------------------------------------------------------------------
def tinyvgg_forward(x_nchw, params):
    """Returns logits of shape (B, OUT_CH).  x_nchw: (B, IN_CH, HW, HW) f32."""
    return _tinyvgg_forward_jit(x_nchw, params, _roll_is_left())


@functools.partial(jax.jit, static_argnums=2)
def _tinyvgg_forward_jit(x_nchw, params, roll_left):
    w1, b1, w2, b2, w3, b3, w4, b4, wl, bl = params
    B, cin, H, W = x_nchw.shape
    K = KSIZE

    # Spatial bookkeeping: 16 -> 15 -> 14 -> pool 7 -> 6 -> 5 -> pool 2.
    sf = ((H - 2 * (K - 1)) // 2 - 2 * (K - 1)) // 2
    npos = sf * sf
    assert HIDDEN * npos == wl.shape[1], "nn.Linear(160, .) pins hidden*Hf*Wf"

    # Lane-dense layout: lane(h, w, b) = (h*W + w)*B + b.
    lanes = H * W * B
    x_flat = jnp.transpose(x_nchw, (1, 2, 3, 0)).reshape(cin, lanes)

    # Lane strides of the conv grid before / after the first pool.
    row0, col0 = W * B, B
    row1, col1 = 2 * row0, 2 * col0
    off12 = tuple(dy * row0 + dx * col0 for dy in range(K) for dx in range(K))
    off34 = tuple(dy * row1 + dx * col1 for dy in range(K) for dx in range(K))

    def conv_w(w):      # (Cout, Cin, K, K) -> (K*K, Cout, Cin)
        cout, ci = w.shape[0], w.shape[1]
        return jnp.transpose(w, (2, 3, 0, 1)).reshape(K * K, cout, ci)

    def col(v):         # (N,) -> (N, 1)
        return v.reshape(-1, 1)

    # Final linear constants (nn.Flatten order per sample is (C, Hf, Wf)):
    #   wa[o*npos + p, c]  = wl[o, c*npos + p]
    #   dmask[o*npos+p, l] = 1 iff lane l holds pooled position p (any sample)
    #   par[l, b]          = 1 iff lane l belongs to sample b   (l % B == b)
    #   fold[o, o'*npos+p] = 1 iff o == o'  (sums the per-position partials)
    wa = jnp.transpose(wl.reshape(OUT_CH, HIDDEN, npos), (0, 2, 1))
    wa = wa.reshape(OUT_CH * npos, HIDDEN)
    p_idx = jnp.arange(OUT_CH * npos) % npos
    base = (2 * row1) * (p_idx // sf) + (2 * col1) * (p_idx % sf)
    lane = jnp.arange(lanes)[None, :]
    dmask = ((lane >= base[:, None]) &
             (lane < base[:, None] + B)).astype(jnp.float32)
    par = (jnp.arange(lanes)[:, None] % B
           == jnp.arange(B)[None, :]).astype(jnp.float32)
    fold = (jnp.arange(OUT_CH * npos)[None, :] // npos
            == jnp.arange(OUT_CH)[:, None]).astype(jnp.float32)

    ins = [x_flat,
           conv_w(w1), col(b1), conv_w(w2), col(b2),
           conv_w(w3), col(b3), conv_w(w4), col(b4),
           wa, dmask, par, fold, col(bl)]

    def full_spec(a):
        nd = a.ndim
        return pl.BlockSpec(a.shape, lambda i: (0,) * nd)

    out = pl.pallas_call(
        _make_kernel(off12, off34, (row0, col0), (row1, col1), roll_left),
        out_shape=jax.ShapeDtypeStruct((OUT_CH, B), jnp.float32),
        grid=(1,),                       # whole batch in a single invocation
        in_specs=[full_spec(a) for a in ins],
        out_specs=pl.BlockSpec((OUT_CH, B), lambda i: (0, 0)),
        compiler_params=pltpu.CompilerParams(
            dimension_semantics=("arbitrary",)),
    )(*ins)
    return out.T                         # (B, OUT_CH)


def tinyvgg_apply(x_nchw, params, target=None):
    """Mirrors TinyVGG.forward: returns (logits, loss)."""
    logits = tinyvgg_forward(x_nchw, params)
    if target is None:
        return logits, None
    # Cheap glue: optional cross-entropy computed in plain JAX outside the kernel.
    logp = jax.nn.log_softmax(logits, axis=-1)
    loss = -jnp.mean(jnp.take_along_axis(logp, target[:, None], axis=-1)[:, 0])
    return logits, loss


# ----------------------------------------------------------------------------
# Pure-JAX (XLA) reference matching the PyTorch module semantics.
# ----------------------------------------------------------------------------
def reference_forward(x, params):
    w1, b1, w2, b2, w3, b3, w4, b4, wl, bl = params
    prec = lax.Precision.HIGHEST

    def conv_relu(y, w, b):
        y = lax.conv_general_dilated(y, w, (1, 1), "VALID",
                                     dimension_numbers=("NCHW", "OIHW", "NCHW"),
                                     precision=prec)
        return jax.nn.relu(y + b[None, :, None, None])

    def pool(y):
        return lax.reduce_window(y, -jnp.inf, lax.max,
                                 (1, 1, 2, 2), (1, 1, 2, 2), "VALID")

    y = conv_relu(x, w1, b1)
    y = conv_relu(y, w2, b2)
    y = pool(y)
    y = conv_relu(y, w3, b3)
    y = conv_relu(y, w4, b4)
    y = pool(y)
    flat = y.reshape(y.shape[0], -1)                  # (B, 160), order (C, Hf, Wf)
    return jnp.dot(flat, wl.T, precision=prec) + bl


def init_params(key):
    ks = jax.random.split(key, 10)

    def nrm(k, shape, scale=0.1):
        return scale * jax.random.normal(k, shape, dtype=jnp.float32)

    w1, b1 = nrm(ks[0], (HIDDEN, IN_CH, KSIZE, KSIZE)), nrm(ks[1], (HIDDEN,))
    w2, b2 = nrm(ks[2], (HIDDEN, HIDDEN, KSIZE, KSIZE)), nrm(ks[3], (HIDDEN,))
    w3, b3 = nrm(ks[4], (HIDDEN, HIDDEN, KSIZE, KSIZE)), nrm(ks[5], (HIDDEN,))
    w4, b4 = nrm(ks[6], (HIDDEN, HIDDEN, KSIZE, KSIZE)), nrm(ks[7], (HIDDEN,))
    wl, bl = nrm(ks[8], (OUT_CH, 160)), nrm(ks[9], (OUT_CH,))
    return (w1, b1, w2, b2, w3, b3, w4, b4, wl, bl)


if __name__ == "__main__":
    key = jax.random.PRNGKey(0)
    kx, kp = jax.random.split(key)
    x = jax.random.normal(kx, (BATCH, IN_CH, HW, HW), dtype=jnp.float32)
    params = init_params(kp)

    _roll_is_left()                       # resolve roll convention eagerly

    logits, loss = tinyvgg_apply(x, params, target=None)
    logits = jax.block_until_ready(logits)
    assert logits.shape == (BATCH, OUT_CH) and loss is None

    ref = jax.block_until_ready(reference_forward(x, params))
    if not jnp.allclose(logits, ref, atol=1e-4, rtol=1e-4):
        raise AssertionError(
            f"Pallas kernel mismatch vs reference:\n{logits}\nvs\n{ref}")
    print("KERNEL_OK")
</pallas_src>

<mosaic_0001>
module attributes {stable_mosaic.version = 11 : i64} {
  func.func @probe(%arg0: i32, %arg1: memref<8x128xf32, #tpu.memory_space<vmem>>, %arg2: memref<8x128xf32, #tpu.memory_space<vmem>>) attributes {dimension_semantics = [#tpu.dimension_semantics<arbitrary>], iteration_bounds = array<i64: 1>, scalar_prefetch = 0 : i64, scratch_operands = 0 : i64, tpu.core_type = #tpu.core_type<tc>, window_params = [{pipeline_mode = #tpu.pipeline_mode<synchronous>, transform_indices = @transform_0, window_bounds = array<i64: 8, 128>}, {pipeline_mode = #tpu.pipeline_mode<synchronous>, transform_indices = @transform_1, window_bounds = array<i64: 8, 128>}]} {
    %c0 = arith.constant 0 : index
    %c0_0 = arith.constant 0 : index
    %0 = vector.load %arg1[%c0, %c0_0] : memref<8x128xf32, #tpu.memory_space<vmem>>, vector<8x128xf32>
    %c1_i32 = arith.constant 1 : i32
    %1 = tpu.dynamic_rotate %0 by %c1_i32 dim 1 : vector<8x128xf32>, i32 -> vector<8x128xf32>
    %c0_1 = arith.constant 0 : index
    %c0_2 = arith.constant 0 : index
    %2 = vector.load %arg2[%c0_1, %c0_2] : memref<8x128xf32, #tpu.memory_space<vmem>>, vector<8x128xf32>
    tpu.vector_store %arg2[%c0_1, %c0_2], %1 {strides = array<i32>} : memref<8x128xf32, #tpu.memory_space<vmem>>, vector<8x128xf32>,
    return
  }
  func.func @transform_0(%arg0: i32) -> (i32, i32) {
    %c0_i32 = arith.constant 0 : i32
    %c0_i32_0 = arith.constant 0 : i32
    %c0_i32_1 = arith.constant 0 : i32
    return %c0_i32, %c0_i32_0 : i32, i32
  }
  func.func @transform_1(%arg0: i32) -> (i32, i32) {
    %c0_i32 = arith.constant 0 : i32
    %c0_i32_0 = arith.constant 0 : i32
    %c0_i32_1 = arith.constant 0 : i32
    return %c0_i32, %c0_i32_0 : i32, i32
  }
}

</mosaic_0001>

<llo_original>
// kernel: tpu_custom_call.1
$region0: #{tpu_custom_call.1}
  #allocation0 [shape = 'u32[]', space=smem, size = 0x4, offset = 0x4, fixed_abs, tag = 'smem constant byte address 0x4 - core index']
  #allocation1 [shape = 'u32[144,128]{1,0:T(1,128)}', space=vmem, size = 0x12000, scoped, tag = 'internal scratch']
  %s0 = inlined_call_operand.hbm [shape: f32[8,128], index: 0, kind: input, shape index: {}]
  %s1 = inlined_call_operand.hbm [shape: f32[8,128], index: 1, kind: output, shape index: {}]
  %s2 = sld [smem:[#allocation0]]
  $region18: #{tpu_custom_call.1} parent=0
    _
  %s4 = ssub.s32 1, %s2
  %s5 = scalar_select 0, %s4, %s2
  $region1: #{tpu_custom_call.1} parent=0
    #allocation2 [shape = 'u8[4096]{0}', space=vmem, size = 0x1000, scoped, tag = 'input window, operand 0, single buffered']
    #allocation3 [shape = 's32[1]{0}', space=sflag, size = 0x4, scoped, tag = 'scoped memory for tpu_custom_call.1']
    #allocation4 [shape = 's32[1]{0}', space=sflag, size = 0x4, scoped, tag = 'scoped memory for tpu_custom_call.1']
    #allocation5 [shape = 'u8[4096]{0}', space=vmem, size = 0x1000, scoped, tag = 'output window, operand 0, single buffered']
    %6 = vsyncpa [#allocation3], 0
    %7 = vsyncpa [#allocation4], 0
    // Predicated region
    $region2: #{tpu_custom_call.1} parent=1 // pred_check
      _
    $region3: #{tpu_custom_call.1} parent=1 // pred_check_branch
      %9 = sbr.rel (0) target = $region5
    $region4: #{tpu_custom_call.1} parent=1 // pred_region
      %s11 = ssub.s32 128, 128
      %12 = vsyncadd [#allocation3], %s11
      %s14 = sshll.u32 [#allocation2], 4
      %s15 = int_to_ptr.vmem [resolvable:$true] %s14
      %17 = dma.hbm_to_vmem [thread:$0]  %s0, 128, %s15, [#allocation3]
    $region5: #{tpu_custom_call.1} parent=1 // pred_fallthru
      _
    // Predicated region
    $region6: #{tpu_custom_call.1} parent=1 // pred_check
      _
    $region7: #{tpu_custom_call.1} parent=1 // pred_check_branch
      %19 = sbr.rel (0) target = $region9
    $region8: #{tpu_custom_call.1} parent=1 // pred_region
      %20 = dma.done [#allocation3], 128
    $region9: #{tpu_custom_call.1} parent=1 // pred_fallthru
      _
    %v21 = vld [vmem:[#allocation2] sm:$0xff]
    %22 = vrot.lane.b32.xlu0 %v21, 1
    %v23 = vpop.permute.xlu0 %22
    %24 = vst [vmem:[#allocation5] sm:$0xff] %v23
    // Predicated region
    $region10: #{tpu_custom_call.1} parent=1 // pred_check
      _
    $region11: #{tpu_custom_call.1} parent=1 // pred_check_branch
      %26 = sbr.rel (0) target = $region13
    $region12: #{tpu_custom_call.1} parent=1 // pred_region
      %s28 = ssub.s32 128, 128
      %29 = vsyncadd [#allocation4], %s28
      %s31 = sshll.u32 [#allocation5], 4
      %s32 = int_to_ptr.vmem [resolvable:$true] %s31
      %34 = dma.vmem_to_hbm [thread:$0]  %s32, 128, %s1, [#allocation4]
    $region13: #{tpu_custom_call.1} parent=1 // pred_fallthru
      _
    // Predicated region
    $region14: #{tpu_custom_call.1} parent=1 // pred_check
      _
    $region15: #{tpu_custom_call.1} parent=1 // pred_check_branch
      %36 = sbr.rel (0) target = $region17
    $region16: #{tpu_custom_call.1} parent=1 // pred_region
      %37 = dma.done [#allocation4], 128
    $region17: #{tpu_custom_call.1} parent=1 // pred_fallthru
      _
    %38 = vsyncpa [#allocation3], 1
    %39 = vsyncpa [#allocation4], 1

</llo_original>
